<compile_context>
chip_gen: v7x
topology: tpu7x:2x2x1
jax: 0.10.0
libtpu: 0.0.40
codegen_flags: <defaults>
</compile_context>

<pallas_src>
import functools

import jax
import jax.numpy as jnp
from jax.experimental import pallas as pl
from jax.experimental.pallas import tpu as pltpu


# Optional numerics trade (review): store the graph in bf16 and run the
# aggregation matmul with bf16 inputs / f32 accumulation. Off by default to
# keep nn.Linear f32 semantics.
_AGG_IN_BF16 = False


# ----------------------------------------------------------------------------
# Small helpers
# ----------------------------------------------------------------------------
def _round_up(x, m):
    return (x + m - 1) // m * m


def _largest_aligned_divisor(n, cap, align):
    """Largest multiple of `align` that divides `n` and is <= cap (0 if none)."""
    t = (min(cap, n) // align) * align
    while t >= align:
        if n % t == 0:
            return t
        t -= align
    return 0


def _leaky_relu(x, slope=0.1):
    return jnp.where(x >= 0, x, slope * x)


def _stage_compute(g, x, wct, w4t):
    """One STAR-GCN stage: leaky(g @ x) @ (W3@Wh1).T -> leaky -> @ W4.T."""
    if _AGG_IN_BF16:
        x = x.astype(jnp.bfloat16)  # graph is already bf16 wrapper-side
    agg = jnp.dot(g, x, preferred_element_type=jnp.float32)
    h = _leaky_relu(agg, 0.1)
    h = _leaky_relu(jnp.dot(h, wct, preferred_element_type=jnp.float32), 0.1)
    return jnp.dot(h, w4t, preferred_element_type=jnp.float32)


def _tpu_params():
    """(vmem_limit_bytes, megacore) for the current backend, with safe fallbacks."""
    phys_vmem = 64 * 1024 * 1024  # conservative default (v7x per-core VMEM)
    try:
        phys_vmem = int(pltpu.get_tpu_info().vmem_capacity_bytes)
    except Exception:
        pass
    vmem_limit = min((phys_vmem * 3) // 4, 112 * 1024 * 1024)

    megacore = False
    try:
        kind = jax.devices()[0].device_kind.lower()
        # Chips exposing 2 TensorCores to a single Mosaic kernel.
        megacore = any(tag in kind for tag in ("v4", "v5p", "v7"))
    except Exception:
        pass
    return vmem_limit, megacore


# ----------------------------------------------------------------------------
# Kernels
# ----------------------------------------------------------------------------
def _fused_kernel(graph_ref, x_ref, wct_ref, w4t_ref, out_ref, x1_ref,
                  *, resident_graph, nn_cols):
    """Both STAR-GCN stages in one call.

    grid = (stage, row_tile).  Stage 0: x0 -> x1 (kept resident in the VMEM
    scratch `x1_ref`), stage 1: x1 -> x2.  The stacked output block index
    depends on the stage, so every output block is written exactly once.
    """
    s = pl.program_id(0)
    r = pl.program_id(1)
    tm = out_ref.shape[1]
    row0 = pl.multiple_of(r * tm, tm)

    if resident_graph:
        # Whole graph lives in VMEM; slice this tile's rows (sublane-aligned).
        g = graph_ref[pl.ds(row0, tm), :]
    else:
        g = graph_ref[...]
    wct = wct_ref[...]
    w4t = w4t_ref[...]

    @pl.when(s == 0)
    def _():
        x1_tile = _stage_compute(g, x_ref[...], wct, w4t)
        x1_ref[pl.ds(row0, tm), :] = x1_tile  # keep x1 resident for stage 1
        out_ref[0] = x1_tile

    @pl.when(s == 1)
    def _():
        out_ref[0] = _stage_compute(g, x1_ref[:nn_cols, :], wct, w4t)


def _stage_kernel(graph_ref, x_ref, wct_ref, w4t_ref, out_ref):
    """Single STAR-GCN stage on one graph row-slab (megacore / split path)."""
    out_ref[...] = _stage_compute(graph_ref[...], x_ref[...],
                                  wct_ref[...], w4t_ref[...])


# ----------------------------------------------------------------------------
# Wrapper
# ----------------------------------------------------------------------------
def _star_gcn_stages(graph, x0, w_h1, w_3, w_4, split_stages=None):
    n, d = x0.shape
    assert graph.shape == (n, n)

    vmem_limit, megacore = _tpu_params()
    if split_stages is None:
        split_stages = megacore

    align = 16 if _AGG_IN_BF16 else 8          # sublane tiling of the graph dtype
    gbytes = 2 if _AGG_IN_BF16 else 4
    dp = _round_up(d, 128)                      # lane-dense latent dim
    n8 = _round_up(n, align)

    # Row-tile cap per generation (bigger slabs on 128 MiB-VMEM chips).
    tm_cap = 1024 if vmem_limit >= 96 * 1024 * 1024 else 512
    tm_cap = max(align, min(tm_cap, n8))

    # --- VMEM accounting (conservative: every block assumed double-buffered,
    #     incl. constant-index residents, since pipeline_mode is not used) ---
    weights_b = 2 * 2 * dp * dp * 4                       # (W3@Wh1).T + W4.T
    x_res_b = 2 * n8 * dp * 4                             # resident x input
    x1_scr_b = 0 if split_stages else (n8 + tm_cap) * dp * 4   # fused x1 scratch
    slack_b = 1 * 1024 * 1024                              # Mosaic internals
    fixed_b = weights_b + x_res_b + x1_scr_b + slack_b

    # Per output-row cost: graph slab (2 bufs) + output (2 bufs) + intermediates.
    per_row_b = 2 * n8 * gbytes + 2 * dp * 4 + 4 * dp * 4
    avail = max(vmem_limit - fixed_b, 8 * per_row_b)
    tm_budget = max(align, ((avail // per_row_b) // align) * align)

    tm_target = max(align, (min(tm_cap, tm_budget, n8) // align) * align)
    tm = _largest_aligned_divisor(n8, tm_target, align)
    if tm < min(128, tm_target):
        # No decent divisor of n8: accept a small row-pad of the graph instead.
        tm = tm_target
    nn_rows = _round_up(n8, tm)
    nn_cols = n8
    r_tiles = nn_rows // tm

    # Resident-graph mode (fused path only): graph streamed from HBM once.
    graph_res_b = 2 * nn_rows * nn_cols * gbytes           # 2 bufs, conservative
    per_row_res_b = 2 * dp * 4 + 4 * dp * 4
    resident_graph = (not split_stages) and (
        fixed_b + graph_res_b + tm * per_row_res_b <= vmem_limit)

    # --- Pad / fold weights wrapper-side (no in-kernel transposes) ----------
    def pad2(a, rows, cols, dtype=jnp.float32):
        a = a.astype(dtype)
        if a.shape == (rows, cols):
            return a
        return jnp.pad(a, ((0, rows - a.shape[0]), (0, cols - a.shape[1])))

    gdtype = jnp.bfloat16 if _AGG_IN_BF16 else jnp.float32
    graph_p = pad2(graph, nn_rows, nn_cols, gdtype)
    x0_p = pad2(x0, nn_cols, dp)
    # Fold W_h1 and W_3 (no nonlinearity between them in the torch forward):
    #   (h @ Wh1.T) @ W3.T == h @ (W3 @ Wh1).T
    w_c_t_p = pad2((w_3 @ w_h1).T, dp, dp)
    w_4_t_p = pad2(w_4.T, dp, dp)

    if split_stages:
        # --- Two calls (one per stage); row axis megacore-parallel ---------
        def run_stage(x_p):
            grid_spec = pltpu.PrefetchScalarGridSpec(
                num_scalar_prefetch=0,
                grid=(r_tiles,),
                in_specs=[
                    pl.BlockSpec((tm, nn_cols), lambda r: (r, 0)),   # graph slab
                    pl.BlockSpec((nn_cols, dp), lambda r: (0, 0)),   # x (resident)
                    pl.BlockSpec((dp, dp), lambda r: (0, 0)),        # (W3@Wh1).T
                    pl.BlockSpec((dp, dp), lambda r: (0, 0)),        # W4.T
                ],
                out_specs=pl.BlockSpec((tm, dp), lambda r: (r, 0)),
            )
            return pl.pallas_call(
                _stage_kernel,
                out_shape=jax.ShapeDtypeStruct((nn_rows, dp), jnp.float32),
                grid_spec=grid_spec,
                compiler_params=pltpu.CompilerParams(
                    dimension_semantics=("parallel",),
                    vmem_limit_bytes=vmem_limit,
                ),
            )(graph_p, x_p, w_c_t_p, w_4_t_p)

        x1_p = run_stage(x0_p)
        x1_in = x1_p if nn_rows == nn_cols else x1_p[:nn_cols]
        x2_p = run_stage(x1_in)
        return x1_p[:n, :d], x2_p[:n, :d]

    # --- Fused single call: graph + x1 stay resident across both stages ----
    if resident_graph:
        graph_spec = pl.BlockSpec((nn_rows, nn_cols), lambda s, r: (0, 0))
    else:
        graph_spec = pl.BlockSpec((tm, nn_cols), lambda s, r: (r, 0))

    grid_spec = pltpu.PrefetchScalarGridSpec(
        num_scalar_prefetch=0,
        grid=(2, r_tiles),
        in_specs=[
            graph_spec,
            pl.BlockSpec((nn_cols, dp), lambda s, r: (0, 0)),   # x0 (resident)
            pl.BlockSpec((dp, dp), lambda s, r: (0, 0)),        # (W3@Wh1).T
            pl.BlockSpec((dp, dp), lambda s, r: (0, 0)),        # W4.T
        ],
        # Stacked (x1, x2) output: block index depends on the stage, so every
        # output block is visited and written exactly once.
        out_specs=pl.BlockSpec((1, tm, dp), lambda s, r: (s, r, 0)),
        scratch_shapes=[pltpu.VMEM((nn_rows, dp), jnp.float32)],   # resident x1
    )

    out = pl.pallas_call(
        functools.partial(_fused_kernel,
                          resident_graph=resident_graph, nn_cols=nn_cols),
        out_shape=jax.ShapeDtypeStruct((2, nn_rows, dp), jnp.float32),
        grid_spec=grid_spec,
        compiler_params=pltpu.CompilerParams(
            # Stage 1 consumes the complete x1 written by stage 0 via the VMEM
            # scratch, so both axes must execute sequentially in this path.
            dimension_semantics=("arbitrary", "arbitrary"),
            vmem_limit_bytes=vmem_limit,
        ),
    )(graph_p, x0_p, w_c_t_p, w_4_t_p)

    return out[0, :n, :d], out[1, :n, :d]


def star_gcn_forward(graph, emb_user, emb_item, w_h1, w_3, w_4,
                     split_stages=None):
    """Mirrors star_gcn.forward().

    Returns (x_0, x_1, x_2, emb_user, emb_item, W_h1, W_3, W_4).
    """
    x_0 = jnp.concatenate([emb_user, emb_item], axis=0)
    x_1, x_2 = _star_gcn_stages(graph, x_0, w_h1, w_3, w_4, split_stages)
    return x_0, x_1, x_2, emb_user, emb_item, w_h1, w_3, w_4


def _xavier_uniform(key, shape, dtype=jnp.float32):
    fan_in, fan_out = shape[1], shape[0]
    limit = (6.0 / (fan_in + fan_out)) ** 0.5
    return jax.random.uniform(key, shape, dtype, minval=-limit, maxval=limit)


if __name__ == "__main__":
    num_user, num_item, dim_latent = 8, 8, 32
    n = num_user + num_item

    key = jax.random.PRNGKey(0)
    k_graph, k_u, k_i, k_h1, k_3, k_4 = jax.random.split(key, 6)

    # Dense "normalized adjacency" stand-in for the sparse graph.
    graph = jax.random.uniform(k_graph, (n, n), jnp.float32)
    graph = graph / jnp.sum(graph, axis=1, keepdims=True)

    emb_user = _xavier_uniform(k_u, (num_user, dim_latent))
    emb_item = _xavier_uniform(k_i, (num_item, dim_latent))
    w_h1 = _xavier_uniform(k_h1, (dim_latent, dim_latent))   # nn.Linear weight (out, in)
    w_3 = _xavier_uniform(k_3, (dim_latent, dim_latent))
    w_4 = _xavier_uniform(k_4, (dim_latent, dim_latent))

    # Pure-JAX reference (mirrors the torch ops exactly, without folding).
    def ref_stage(x):
        agg = graph @ x
        h = jnp.where(agg >= 0, agg, 0.1 * agg)
        h = h @ w_h1.T
        xi = h @ w_3.T
        xi = jnp.where(xi >= 0, xi, 0.1 * xi)
        return xi @ w_4.T

    x0_ref = jnp.concatenate([emb_user, emb_item], axis=0)
    x1_ref = ref_stage(x0_ref)
    x2_ref = ref_stage(x1_ref)

    fwd = jax.jit(star_gcn_forward, static_argnames=("split_stages",))

    # Exercise both code paths (fused single-call and megacore split) so the
    # kernel is validated regardless of which chip generation runs it.
    for split in (False, True):
        outs = jax.block_until_ready(
            fwd(graph, emb_user, emb_item, w_h1, w_3, w_4, split_stages=split))
        assert jnp.allclose(outs[0], x0_ref)
        assert jnp.allclose(outs[1], x1_ref, atol=1e-4, rtol=1e-4)
        assert jnp.allclose(outs[2], x2_ref, atol=1e-4, rtol=1e-4)

    print("KERNEL_OK")
</pallas_src>

<mosaic_0001>
module attributes {stable_mosaic.version = 11 : i64} {
  func.func @_fused_kernel(%arg0: i32, %arg1: i32, %arg2: memref<16x16xf32, #tpu.memory_space<vmem>>, %arg3: memref<16x128xf32, #tpu.memory_space<vmem>>, %arg4: memref<128x128xf32, #tpu.memory_space<vmem>>, %arg5: memref<128x128xf32, #tpu.memory_space<vmem>>, %arg6: memref<1x16x128xf32, #tpu.memory_space<vmem>>, %arg7: memref<16x128xf32, #tpu.memory_space<vmem>>) attributes {dimension_semantics = [#tpu.dimension_semantics<arbitrary>, #tpu.dimension_semantics<arbitrary>], iteration_bounds = array<i64: 2, 1>, scalar_prefetch = 0 : i64, scratch_operands = 1 : i64, tpu.core_type = #tpu.core_type<tc>, window_params = [{pipeline_mode = #tpu.pipeline_mode<synchronous>, transform_indices = @transform_0, window_bounds = array<i64: 16, 16>}, {pipeline_mode = #tpu.pipeline_mode<synchronous>, transform_indices = @transform_1, window_bounds = array<i64: 16, 128>}, {pipeline_mode = #tpu.pipeline_mode<synchronous>, transform_indices = @transform_2, window_bounds = array<i64: 128, 128>}, {pipeline_mode = #tpu.pipeline_mode<synchronous>, transform_indices = @transform_3, window_bounds = array<i64: 128, 128>}, {transform_indices = @transform_4, window_bounds = array<i64: 1, 16, 128>}]} {
    %c16_i32 = arith.constant 16 : i32
    %0 = arith.muli %arg1, %c16_i32 : i32
    %1 = tpu.assume_multiple %0, 16 : i32
    %2 = arith.index_cast %1 : i32 to index
    %c0 = arith.constant 0 : index
    %3 = vector.load %arg2[%2, %c0] : memref<16x16xf32, #tpu.memory_space<vmem>>, vector<16x16xf32>
    %c0_0 = arith.constant 0 : index
    %c0_1 = arith.constant 0 : index
    %4 = vector.load %arg4[%c0_0, %c0_1] : memref<128x128xf32, #tpu.memory_space<vmem>>, vector<128x128xf32>
    %c0_2 = arith.constant 0 : index
    %c0_3 = arith.constant 0 : index
    %5 = vector.load %arg5[%c0_2, %c0_3] : memref<128x128xf32, #tpu.memory_space<vmem>>, vector<128x128xf32>
    %c0_i32 = arith.constant 0 : i32
    %6 = arith.cmpi eq, %arg0, %c0_i32 : i32
    %7 = arith.extui %6 : i1 to i32
    %c0_i32_4 = arith.constant 0 : i32
    %8 = arith.cmpi ne, %7, %c0_i32_4 : i32
    scf.if %8 {
      %c0_6 = arith.constant 0 : index
      %c0_7 = arith.constant 0 : index
      %12 = vector.load %arg3[%c0_6, %c0_7] : memref<16x128xf32, #tpu.memory_space<vmem>>, vector<16x128xf32>
      %cst = arith.constant dense<0.000000e+00> : vector<16x128xf32>
      %13 = tpu.matmul %3, %12, %cst {dimension_numbers = #tpu.dot_dimension_numbers<[1], [0], [0], [1], [0, 0, 1, 1], [], []>} : vector<16x16xf32>, vector<16x128xf32>, vector<16x128xf32> -> vector<16x128xf32>
      %cst_8 = arith.constant 0.000000e+00 : f32
      %14 = vector.broadcast %cst_8 : f32 to vector<16x128xf32>
      %15 = arith.cmpf oge, %13, %14 : vector<16x128xf32>
      %cst_9 = arith.constant 1.000000e-01 : f32
      %16 = vector.broadcast %cst_9 : f32 to vector<16x128xf32>
      %17 = arith.mulf %16, %13 : vector<16x128xf32>
      %18 = arith.select %15, %13, %17 : vector<16x128xi1>, vector<16x128xf32>
      %cst_10 = arith.constant dense<0.000000e+00> : vector<16x128xf32>
      %19 = tpu.matmul %18, %4, %cst_10 {dimension_numbers = #tpu.dot_dimension_numbers<[1], [0], [0], [1], [0, 0, 1, 1], [], []>} : vector<16x128xf32>, vector<128x128xf32>, vector<16x128xf32> -> vector<16x128xf32>
      %cst_11 = arith.constant 0.000000e+00 : f32
      %20 = vector.broadcast %cst_11 : f32 to vector<16x128xf32>
      %21 = arith.cmpf oge, %19, %20 : vector<16x128xf32>
      %cst_12 = arith.constant 1.000000e-01 : f32
      %22 = vector.broadcast %cst_12 : f32 to vector<16x128xf32>
      %23 = arith.mulf %22, %19 : vector<16x128xf32>
      %24 = arith.select %21, %19, %23 : vector<16x128xi1>, vector<16x128xf32>
      %cst_13 = arith.constant dense<0.000000e+00> : vector<16x128xf32>
      %25 = tpu.matmul %24, %5, %cst_13 {dimension_numbers = #tpu.dot_dimension_numbers<[1], [0], [0], [1], [0, 0, 1, 1], [], []>} : vector<16x128xf32>, vector<128x128xf32>, vector<16x128xf32> -> vector<16x128xf32>
      %26 = arith.index_cast %1 : i32 to index
      %c0_14 = arith.constant 0 : index
      %27 = vector.load %arg7[%26, %c0_14] : memref<16x128xf32, #tpu.memory_space<vmem>>, vector<16x128xf32>
      tpu.vector_store %arg7[%26, %c0_14], %25 {strides = array<i32>} : memref<16x128xf32, #tpu.memory_space<vmem>>, vector<16x128xf32>,
      %c0_15 = arith.constant 0 : index
      %c0_16 = arith.constant 0 : index
      %c0_17 = arith.constant 0 : index
      %28 = vector.load %arg6[%c0_15, %c0_16, %c0_17] : memref<1x16x128xf32, #tpu.memory_space<vmem>>, vector<1x16x128xf32>
      %29 = vector.shape_cast %28 : vector<1x16x128xf32> to vector<16x128xf32>
      %30 = vector.shape_cast %25 : vector<16x128xf32> to vector<1x16x128xf32>
      tpu.vector_store %arg6[%c0_15, %c0_16, %c0_17], %30 {strides = array<i32>} : memref<1x16x128xf32, #tpu.memory_space<vmem>>, vector<1x16x128xf32>,
    } else {
    }
    %c1_i32 = arith.constant 1 : i32
    %9 = arith.cmpi eq, %arg0, %c1_i32 : i32
    %10 = arith.extui %9 : i1 to i32
    %c0_i32_5 = arith.constant 0 : i32
    %11 = arith.cmpi ne, %10, %c0_i32_5 : i32
    scf.if %11 {
      %c0_6 = arith.constant 0 : index
      %c0_7 = arith.constant 0 : index
      %12 = vector.load %arg7[%c0_6, %c0_7] : memref<16x128xf32, #tpu.memory_space<vmem>>, vector<16x128xf32>
      %cst = arith.constant dense<0.000000e+00> : vector<16x128xf32>
      %13 = tpu.matmul %3, %12, %cst {dimension_numbers = #tpu.dot_dimension_numbers<[1], [0], [0], [1], [0, 0, 1, 1], [], []>} : vector<16x16xf32>, vector<16x128xf32>, vector<16x128xf32> -> vector<16x128xf32>
      %cst_8 = arith.constant 0.000000e+00 : f32
      %14 = vector.broadcast %cst_8 : f32 to vector<16x128xf32>
      %15 = arith.cmpf oge, %13, %14 : vector<16x128xf32>
      %cst_9 = arith.constant 1.000000e-01 : f32
      %16 = vector.broadcast %cst_9 : f32 to vector<16x128xf32>
      %17 = arith.mulf %16, %13 : vector<16x128xf32>
      %18 = arith.select %15, %13, %17 : vector<16x128xi1>, vector<16x128xf32>
      %cst_10 = arith.constant dense<0.000000e+00> : vector<16x128xf32>
      %19 = tpu.matmul %18, %4, %cst_10 {dimension_numbers = #tpu.dot_dimension_numbers<[1], [0], [0], [1], [0, 0, 1, 1], [], []>} : vector<16x128xf32>, vector<128x128xf32>, vector<16x128xf32> -> vector<16x128xf32>
      %cst_11 = arith.constant 0.000000e+00 : f32
      %20 = vector.broadcast %cst_11 : f32 to vector<16x128xf32>
      %21 = arith.cmpf oge, %19, %20 : vector<16x128xf32>
      %cst_12 = arith.constant 1.000000e-01 : f32
      %22 = vector.broadcast %cst_12 : f32 to vector<16x128xf32>
      %23 = arith.mulf %22, %19 : vector<16x128xf32>
      %24 = arith.select %21, %19, %23 : vector<16x128xi1>, vector<16x128xf32>
      %cst_13 = arith.constant dense<0.000000e+00> : vector<16x128xf32>
      %25 = tpu.matmul %24, %5, %cst_13 {dimension_numbers = #tpu.dot_dimension_numbers<[1], [0], [0], [1], [0, 0, 1, 1], [], []>} : vector<16x128xf32>, vector<128x128xf32>, vector<16x128xf32> -> vector<16x128xf32>
      %c0_14 = arith.constant 0 : index
      %c0_15 = arith.constant 0 : index
      %c0_16 = arith.constant 0 : index
      %26 = vector.load %arg6[%c0_14, %c0_15, %c0_16] : memref<1x16x128xf32, #tpu.memory_space<vmem>>, vector<1x16x128xf32>
      %27 = vector.shape_cast %26 : vector<1x16x128xf32> to vector<16x128xf32>
      %28 = vector.shape_cast %25 : vector<16x128xf32> to vector<1x16x128xf32>
      tpu.vector_store %arg6[%c0_14, %c0_15, %c0_16], %28 {strides = array<i32>} : memref<1x16x128xf32, #tpu.memory_space<vmem>>, vector<1x16x128xf32>,
    } else {
    }
    return
  }
  func.func @transform_0(%arg0: i32, %arg1: i32) -> (i32, i32) {
    %c0_i32 = arith.constant 0 : i32
    %c0_i32_0 = arith.constant 0 : i32
    %c0_i32_1 = arith.constant 0 : i32
    return %c0_i32, %c0_i32_0 : i32, i32
  }
  func.func @transform_1(%arg0: i32, %arg1: i32) -> (i32, i32) {
    %c0_i32 = arith.constant 0 : i32
    %c0_i32_0 = arith.constant 0 : i32
    %c0_i32_1 = arith.constant 0 : i32
    return %c0_i32, %c0_i32_0 : i32, i32
  }
  func.func @transform_2(%arg0: i32, %arg1: i32) -> (i32, i32) {
    %c0_i32 = arith.constant 0 : i32
    %c0_i32_0 = arith.constant 0 : i32
    %c0_i32_1 = arith.constant 0 : i32
    return %c0_i32, %c0_i32_0 : i32, i32
  }
  func.func @transform_3(%arg0: i32, %arg1: i32) -> (i32, i32) {
    %c0_i32 = arith.constant 0 : i32
    %c0_i32_0 = arith.constant 0 : i32
    %c0_i32_1 = arith.constant 0 : i32
    return %c0_i32, %c0_i32_0 : i32, i32
  }
  func.func @transform_4(%arg0: i32, %arg1: i32) -> (i32, i32, i32) {
    %c0_i32 = arith.constant 0 : i32
    %c0_i32_0 = arith.constant 0 : i32
    return %arg0, %arg1, %c0_i32 : i32, i32, i32
  }
}

</mosaic_0001>

<llo_original>
// kernel: star_gcn_forward.1
$region0: #{star_gcn_forward.1}
  #allocation0 [shape = 'u32[]', space=smem, size = 0x4, offset = 0x4, fixed_abs, tag = 'smem constant byte address 0x4 - core index']
  #allocation1 [shape = 'u32[144,128]{1,0:T(1,128)}', space=vmem, size = 0x12000, scoped, tag = 'internal scratch']
  #allocation2 [shape = 'f32[16,128]{1,0:T(8,128)}', space=vmem, size = 0x2000, scoped, tag = 'scratch operand']
  %s0 = inlined_call_operand.vmem [shape: f32[16,16], index: 0, kind: input, shape index: {}]
  %s1 = inlined_call_operand.vmem [shape: f32[16,128], index: 1, kind: input, shape index: {}]
  %s2 = inlined_call_operand.vmem [shape: f32[128,128], index: 2, kind: input, shape index: {}]
  %s3 = inlined_call_operand.vmem [shape: f32[128,128], index: 3, kind: input, shape index: {}]
  %s4 = inlined_call_operand.vmem [shape: f32[2,16,128], index: 4, kind: output, shape index: {}]
  %s5 = sld [smem:[#allocation0]]
  $region57: #{star_gcn_forward.1} parent=0
    _
  %s7 = ssub.s32 1, %s5
  %s8 = scalar_select 0, %s7, %s5
  loop: start=0, step=1, limit=4
  $region2: #{star_gcn_forward.1} parent=0 // loop_pre_header
    _
  $region3: #{star_gcn_forward.1} parent=0 // loop_header
    %s10 = sphi 0, %s14
    %p11 = scmp.ge.s32.totalorder %s10, 4
    %s17 = sphi 0, %s29
    %s18 = sphi 0, %s25
    %s19 = sphi 0, %s17
    %s20 = sphi 0, %s18
    %s21 = sphi 0, %s19
    %s22 = sphi 0, %s20
    %s30 = sphi 0, %s30
    %s32 = sphi 0, %s30
    %s33 = sphi 0, %s32
    %s47 = sphi 0, %s33
    %s51 = sphi 0, %s51
    %s53 = sphi 0, %s51
    %s54 = sphi 0, %s53
    %s68 = sphi 0, %s54
    %s72 = sphi 0, %s72
    %s74 = sphi 0, %s72
    %s75 = sphi 0, %s74
    %s89 = sphi 0, %s75
    %s93 = sphi 0, %s93
    %s95 = sphi 0, %s93
    %s96 = sphi 0, %s95
    %s110 = sphi 0, %s96
    %s118 = sphi 0, %s120
    %s121 = sphi 0, %s118
    %s122 = sphi 0, %s121
    %s138 = sphi 0, %s122
  $region4: #{star_gcn_forward.1} parent=0 // loop_header_branch
    %13 = sbr.rel (%p11) target = $region8
  $region5: #{star_gcn_forward.1} parent=0 // loop_body
    %s15 = ssub.s32 %s10, 1
    %s16 = ssub.s32 %s10, 2
    %s23 = sadd.s32 1, %s18
    %p24 = scmp.ge.s32.totalorder %s23, 1
    %s25 = scalar_select %p24, 0, %s23
    %s26 = sadd.s32 1, %s17
    %s27 = scalar_select %p24, %s26, %s17
    %p28 = scmp.ge.s32.totalorder %s27, 2
    %s29 = scalar_select %p28, 0, %s27
    %s31 = sadd.s32 %s30, 1
    %p34 = scmp.eq.s32.totalorder %s10, 1
    %p35 = scmp.ne.s32.totalorder %s30, %s32
    %p36 = scmp.eq.s32.totalorder %s10, 0
    %p37 = por %p35, %p36
    %p38 = scmp.ne.s32.totalorder %s30, %s32
    %p39 = scmp.eq.s32.totalorder %s15, 1
    %p40 = por %p38, %p39
    %p41 = scmp.ne.s32.totalorder %s32, %s33
    %p42 = scmp.eq.s32.totalorder %s15, 0
    %p43 = por %p41, %p42
    %p44 = scmp.ne.s32.totalorder %s32, %s33
    %p45 = scmp.eq.s32.totalorder %s16, 1
    %p46 = por %p44, %p45
    %p48 = scmp.ne.s32.totalorder %s33, %s47
    %p49 = scmp.eq.s32.totalorder %s16, 0
    %p50 = por %p48, %p49
    %s52 = sadd.s32 %s51, 1
    %p55 = scmp.eq.s32.totalorder %s10, 1
    %p56 = scmp.ne.s32.totalorder %s51, %s53
    %p57 = scmp.eq.s32.totalorder %s10, 0
    %p58 = por %p56, %p57
    %p59 = scmp.ne.s32.totalorder %s51, %s53
    %p60 = scmp.eq.s32.totalorder %s15, 1
    %p61 = por %p59, %p60
    %p62 = scmp.ne.s32.totalorder %s53, %s54
    %p63 = scmp.eq.s32.totalorder %s15, 0
    %p64 = por %p62, %p63
    %p65 = scmp.ne.s32.totalorder %s53, %s54
    %p66 = scmp.eq.s32.totalorder %s16, 1
    %p67 = por %p65, %p66
    %p69 = scmp.ne.s32.totalorder %s54, %s68
    %p70 = scmp.eq.s32.totalorder %s16, 0
    %p71 = por %p69, %p70
    %s73 = sadd.s32 %s72, 1
    %p76 = scmp.eq.s32.totalorder %s10, 1
    %p77 = scmp.ne.s32.totalorder %s72, %s74
    %p78 = scmp.eq.s32.totalorder %s10, 0
    %p79 = por %p77, %p78
    %p80 = scmp.ne.s32.totalorder %s72, %s74
    %p81 = scmp.eq.s32.totalorder %s15, 1
    %p82 = por %p80, %p81
    %p83 = scmp.ne.s32.totalorder %s74, %s75
    %p84 = scmp.eq.s32.totalorder %s15, 0
    %p85 = por %p83, %p84
    %p86 = scmp.ne.s32.totalorder %s74, %s75
    %p87 = scmp.eq.s32.totalorder %s16, 1
    %p88 = por %p86, %p87
    %p90 = scmp.ne.s32.totalorder %s75, %s89
    %p91 = scmp.eq.s32.totalorder %s16, 0
    %p92 = por %p90, %p91
    %s94 = sadd.s32 %s93, 1
    %p97 = scmp.eq.s32.totalorder %s10, 1
    %p98 = scmp.ne.s32.totalorder %s93, %s95
    %p99 = scmp.eq.s32.totalorder %s10, 0
    %p100 = por %p98, %p99
    %p101 = scmp.ne.s32.totalorder %s93, %s95
    %p102 = scmp.eq.s32.totalorder %s15, 1
    %p103 = por %p101, %p102
    %p104 = scmp.ne.s32.totalorder %s95, %s96
    %p105 = scmp.eq.s32.totalorder %s15, 0
    %p106 = por %p104, %p105
    %p107 = scmp.ne.s32.totalorder %s95, %s96
    %p108 = scmp.eq.s32.totalorder %s16, 1
    %p109 = por %p107, %p108
    %p111 = scmp.ne.s32.totalorder %s96, %s110
    %p112 = scmp.eq.s32.totalorder %s16, 0
    %p113 = por %p111, %p112
    %s114 = ssub.s32 %s17, %s29
    %s115 = ssub.s32 %s18, %s25
    %s116 = sor.u32 %s114, %s115
    %p117 = scmp.eq.s32.totalorder %s116, 0
    %s119 = sadd.s32 %s118, 1
    %s120 = scalar_select %p117, %s118, %s119
    %p123 = pneg %p117
    %p124 = scmp.eq.s32.totalorder %s10, 1
    %p125 = por %p123, %p124
    %p126 = scmp.ne.s32.totalorder %s118, %s121
    %p127 = scmp.eq.s32.totalorder %s10, 0
    %p128 = por %p126, %p127
    %p129 = scmp.ne.s32.totalorder %s118, %s121
    %p130 = scmp.eq.s32.totalorder %s15, 1
    %p131 = por %p129, %p130
    %p132 = scmp.ne.s32.totalorder %s121, %s122
    %p133 = scmp.eq.s32.totalorder %s15, 0
    %p134 = por %p132, %p133
    %p135 = scmp.ne.s32.totalorder %s121, %s122
    %p136 = scmp.eq.s32.totalorder %s16, 1
    %p137 = por %p135, %p136
    %p139 = scmp.ne.s32.totalorder %s122, %s138
    %p140 = scmp.eq.s32.totalorder %s16, 0
    %p141 = por %p139, %p140
    %p142 = scmp.le.s32.totalorder 1, %s10
    %p143 = scmp.lt.s32.totalorder %s10, 3
    %p144 = pnand %p142, %p143
    %p145 = pneg %p144
    // Predicated region
    $region9: #{star_gcn_forward.1} parent=5 // pred_check
      _
    $region10: #{star_gcn_forward.1} parent=5 // pred_check_branch
      %147 = sbr.rel (%p144) target = $region12
    $region11: #{star_gcn_forward.1} parent=5 // pred_region
      %s148 = ssub.s32 %s10, 1
      // Predicated region
      $region13: #{star_gcn_forward.1} parent=11 // pred_check
        %p149 = pneg %p43
      $region14: #{star_gcn_forward.1} parent=11 // pred_check_branch
        %151 = sbr.rel (%p149) target = $region16
      $region15: #{star_gcn_forward.1} parent=11 // pred_region
        _
      $region16: #{star_gcn_forward.1} parent=11 // pred_fallthru
        _
      // Predicated region
      $region17: #{star_gcn_forward.1} parent=11 // pred_check
        %p152 = pneg %p64
      $region18: #{star_gcn_forward.1} parent=11 // pred_check_branch
        %154 = sbr.rel (%p152) target = $region20
      $region19: #{star_gcn_forward.1} parent=11 // pred_region
        _
      $region20: #{star_gcn_forward.1} parent=11 // pred_fallthru
        _
      // Predicated region
      $region21: #{star_gcn_forward.1} parent=11 // pred_check
        %p155 = pneg %p85
      $region22: #{star_gcn_forward.1} parent=11 // pred_check_branch
        %157 = sbr.rel (%p155) target = $region24
      $region23: #{star_gcn_forward.1} parent=11 // pred_region
        _
      $region24: #{star_gcn_forward.1} parent=11 // pred_fallthru
        _
      // Predicated region
      $region25: #{star_gcn_forward.1} parent=11 // pred_check
        %p158 = pneg %p106
      $region26: #{star_gcn_forward.1} parent=11 // pred_check_branch
        %160 = sbr.rel (%p158) target = $region28
      $region27: #{star_gcn_forward.1} parent=11 // pred_region
        _
      $region28: #{star_gcn_forward.1} parent=11 // pred_fallthru
        _
    $region12: #{star_gcn_forward.1} parent=5 // pred_fallthru
      _
    %p161 = scmp.lt.s32.totalorder %s10, 2
    // Predicated region
    $region29: #{star_gcn_forward.1} parent=5 // pred_check
      %p162 = pneg %p161
    $region30: #{star_gcn_forward.1} parent=5 // pred_check_branch
      %164 = sbr.rel (%p162) target = $region32
    $region31: #{star_gcn_forward.1} parent=5 // pred_region
      _
    $region32: #{star_gcn_forward.1} parent=5 // pred_fallthru
      _
    %p165 = scmp.le.s32.totalorder 1, %s10
    %p166 = scmp.lt.s32.totalorder %s10, 3
    %p167 = pnand %p165, %p166
    %p168 = pneg %p167
    // Predicated region
    $region33: #{star_gcn_forward.1} parent=5 // pred_check
      _
    $region34: #{star_gcn_forward.1} parent=5 // pred_check_branch
      %170 = sbr.rel (%p167) target = $region36
    $region35: #{star_gcn_forward.1} parent=5 // pred_region
      %s171 = ssub.s32 %s10, 1
      %p172 = pneg %p43
      %p173 = pneg %p40
      %p174 = pneg %p64
      %p175 = pneg %p61
      %p176 = pneg %p85
      %p177 = pneg %p82
      %p178 = pneg %p106
      %p179 = pneg %p103
      %p180 = pneg %p134
      %p181 = pneg %p131
      %s182 = smul.u32 2, %s20
      %p183 = scmp.lt.s32.totalorder %s19, 1
      %s184 = scalar_select %p183, %s19, 1
      %p185 = scmp.lt.s32.totalorder %s182, 1
      %s186 = scalar_select %p185, %s182, 1
      %s187 = smul.addr %s184, 2
      %s188 = sadd.s32 %s186, %s187
      %s189 = smul.addr %s188, 8
      %s190 = scalar_lea.vmem %s4, %s189
      %s191 = smul.u32 2, %s20
      %p192 = scmp.lt.s32.totalorder %s19, 1
      %s193 = scalar_select %p192, %s19, 1
      %p194 = scmp.lt.s32.totalorder %s191, 1
      %s195 = scalar_select %p194, %s191, 1
      %s196 = smul.addr %s193, 2
      %s197 = sadd.s32 %s195, %s196
      %s198 = smul.addr %s197, 8
      %s199 = scalar_lea.vmem %s4, %s198
      %s200 = smul.u32 2, %s20
      %s201 = smul.u32 %s20, 16
      %s202 = scalar_lea.vmem %s0, %s201
      %v203 = vld [vmem:[%s202] sm:$0xff]
      %v204 = vld [vmem:[%s202 + $0x8] sm:$0xff]
      %v205 = vld [vmem:[%s2] sm:$0xff]
      %v206 = vld [vmem:[%s2 + $0x8] sm:$0xff]
      %v207 = vld [vmem:[%s2 + $0x10] sm:$0xff]
      %v208 = vld [vmem:[%s2 + $0x18] sm:$0xff]
      %v209 = vld [vmem:[%s2 + $0x20] sm:$0xff]
      %v210 = vld [vmem:[%s2 + $0x28] sm:$0xff]
      %v211 = vld [vmem:[%s2 + $0x30] sm:$0xff]
      %v212 = vld [vmem:[%s2 + $0x38] sm:$0xff]
      %v213 = vld [vmem:[%s2 + $0x40] sm:$0xff]
      %v214 = vld [vmem:[%s2 + $0x48] sm:$0xff]
      %v215 = vld [vmem:[%s2 + $0x50] sm:$0xff]
      %v216 = vld [vmem:[%s2 + $0x58] sm:$0xff]
      %v217 = vld [vmem:[%s2 + $0x60] sm:$0xff]
      %v218 = vld [vmem:[%s2 + $0x68] sm:$0xff]
      %v219 = vld [vmem:[%s2 + $0x70] sm:$0xff]
      %v220 = vld [vmem:[%s2 + $0x78] sm:$0xff]
      %v221 = vld [vmem:[%s3] sm:$0xff]
      %v222 = vld [vmem:[%s3 + $0x8] sm:$0xff]
      %v223 = vld [vmem:[%s3 + $0x10] sm:$0xff]
      %v224 = vld [vmem:[%s3 + $0x18] sm:$0xff]
      %v225 = vld [vmem:[%s3 + $0x20] sm:$0xff]
      %v226 = vld [vmem:[%s3 + $0x28] sm:$0xff]
      %v227 = vld [vmem:[%s3 + $0x30] sm:$0xff]
      %v228 = vld [vmem:[%s3 + $0x38] sm:$0xff]
      %v229 = vld [vmem:[%s3 + $0x40] sm:$0xff]
      %v230 = vld [vmem:[%s3 + $0x48] sm:$0xff]
      %v231 = vld [vmem:[%s3 + $0x50] sm:$0xff]
      %v232 = vld [vmem:[%s3 + $0x58] sm:$0xff]
      %v233 = vld [vmem:[%s3 + $0x60] sm:$0xff]
      %v234 = vld [vmem:[%s3 + $0x68] sm:$0xff]
      %v235 = vld [vmem:[%s3 + $0x70] sm:$0xff]
      %v236 = vld [vmem:[%s3 + $0x78] sm:$0xff]
      %p237 = scmp.eq.s32.totalorder %s19, 0
      // Predicated region
      $region37: #{star_gcn_forward.1} parent=35 // pred_check
        %p238 = pneg %p237
      $region38: #{star_gcn_forward.1} parent=35 // pred_check_branch
        %240 = sbr.rel (%p238) target = $region40
      $region39: #{star_gcn_forward.1} parent=35 // pred_region
        %v241 = vld [vmem:[%s1] sm:$0xff]
        %v242 = vld [vmem:[%s1 + $0x8] sm:$0xff]
        %vm243 = vcmask 130048
        %v245 = vsel %vm243, %v203, 0
        %v248 = vsel %vm243, %v204, 0
        %250 = vmatprep.subr.mxu0 0.0
        %251 = vmatpush1.msra.mxu0 %v241
        %252 = vmatprep.subr.mxu0 0.0
        %253 = vmatpush1.msra.mxu0 %v242
        %254 = vmatprep.subr.mxu0 0.0
        %255 = vmatpush1.msra.mxu0 0.0
        %256 = vmatprep.subr.mxu0 0.0
        %257 = vmatpush1.msra.mxu0 0.0
        %258 = vmatprep.subr.mxu0 0.0
        %259 = vmatpush1.msra.mxu0 0.0
        %260 = vmatprep.subr.mxu0 0.0
        %261 = vmatpush1.msra.mxu0 0.0
        %262 = vmatprep.subr.mxu0 0.0
        %263 = vmatpush1.msra.mxu0 0.0
        %264 = vmatprep.subr.mxu0 0.0
        %265 = vmatpush1.msra.mxu0 0.0
        %266 = vmatprep.subr.mxu0 0.0
        %267 = vmatpush1.msra.mxu0 0.0
        %268 = vmatprep.subr.mxu0 0.0
        %269 = vmatpush1.msra.mxu0 0.0
        %270 = vmatprep.subr.mxu0 0.0
        %271 = vmatpush1.msra.mxu0 0.0
        %272 = vmatprep.subr.mxu0 0.0
        %273 = vmatpush1.msra.mxu0 0.0
        %274 = vmatprep.subr.mxu0 0.0
        %275 = vmatpush1.msra.mxu0 0.0
        %276 = vmatprep.subr.mxu0 0.0
        %277 = vmatpush1.msra.mxu0 0.0
        %278 = vmatprep.subr.mxu0 0.0
        %279 = vmatpush1.msra.mxu0 0.0
        %280 = vmatprep.subr.mxu0 0.0
        %281 = vmatpush1.msra.mxu0 0.0
        %282 = vmatprep.subr.mxu0 0.0
        %283 = vmatpush1.msra.mxu0 0.0
        %284 = vmatprep.subr.mxu0 0.0
        %285 = vmatpush1.msra.mxu0 0.0
        %286 = vmatprep.subr.mxu0 0.0
        %287 = vmatpush1.msra.mxu0 0.0
        %288 = vmatprep.subr.mxu0 0.0
        %289 = vmatpush1.msra.mxu0 0.0
        %290 = vmatprep.subr.mxu0 0.0
        %291 = vmatpush1.msra.mxu0 0.0
        %292 = vmatprep.subr.mxu0 0.0
        %293 = vmatpush1.msra.mxu0 0.0
        %294 = vmatprep.subr.mxu0 0.0
        %295 = vmatpush1.msra.mxu0 0.0
        %296 = vmatprep.subr.mxu0 0.0
        %297 = vmatpush1.msra.mxu0 0.0
        %298 = vmatprep.subr.mxu0 0.0
        %299 = vmatpush1.msra.mxu0 0.0
        %300 = vmatprep.subr.mxu0 0.0
        %301 = vmatpush1.msra.mxu0 0.0
        %302 = vmatprep.subr.mxu0 0.0
        %303 = vmatpush1.msra.mxu0 0.0
        %304 = vmatprep.subr.mxu0 0.0
        %305 = vmatpush1.msra.mxu0 0.0
        %306 = vmatprep.subr.mxu0 0.0
        %307 = vmatpush1.msra.mxu0 0.0
        %308 = vmatprep.subr.mxu0 0.0
        %309 = vmatpush1.msra.mxu0 0.0
        %310 = vmatprep.subr.mxu0 0.0
        %311 = vmatpush1.msra.mxu0 0.0
        %312 = vmatprep.subr.mxu0 0.0
        %313 = vmatpush1.msra.mxu0 0.0
        %314 = vmatprep.mubr.f32.mxu0 0.0
        %315 = vmatmul.mubr.f32.gmra.mrb[0].mxu0 %v245
        %v316 = vpop.f32.mrb[0].mxu0
        %v317 = vadd.f32 0.0, %v316
        %v318 = vpop.f32.mrb[0].mxu0
        %319 = vmatprep.mubr.f32.mxu0 0.0
        %320 = vmatmul.mubr.f32.gmra.mrb[0].mxu0 %v248
        %v321 = vpop.f32.mrb[0].mxu0
        %v322 = vadd.f32 0.0, %v321
        %v323 = vpop.f32.mrb[0].mxu0
        %324 = vdwg.mxu0
        %vm325 = vcmp.ge.f32.partialorder %v317, 0.0
        %vm326 = vcmp.ge.f32.partialorder %v322, 0.0
        %v327 = vmul.f32 %v317, 0.1
        %v328 = vmul.f32 %v322, 0.1
        %v329 = vsel %vm325, %v317, %v327
        %v330 = vsel %vm326, %v322, %v328
        %331 = vmatprep.subr.mxu0 0.0
        %332 = vmatpush1.msra.mxu0 %v205
        %333 = vmatprep.subr.mxu0 0.0
        %334 = vmatpush1.msra.mxu0 %v206
        %335 = vmatprep.subr.mxu0 0.0
        %336 = vmatpush1.msra.mxu0 %v207
        %337 = vmatprep.subr.mxu0 0.0
        %338 = vmatpush1.msra.mxu0 %v208
        %339 = vmatprep.subr.mxu0 0.0
        %340 = vmatpush1.msra.mxu0 %v209
        %341 = vmatprep.subr.mxu0 0.0
        %342 = vmatpush1.msra.mxu0 %v210
        %343 = vmatprep.subr.mxu0 0.0
        %344 = vmatpush1.msra.mxu0 %v211
        %345 = vmatprep.subr.mxu0 0.0
        %346 = vmatpush1.msra.mxu0 %v212
        %347 = vmatprep.subr.mxu0 0.0
        %348 = vmatpush1.msra.mxu0 %v213
        %349 = vmatprep.subr.mxu0 0.0
        %350 = vmatpush1.msra.mxu0 %v214
        %351 = vmatprep.subr.mxu0 0.0
        %352 = vmatpush1.msra.mxu0 %v215
        %353 = vmatprep.subr.mxu0 0.0
        %354 = vmatpush1.msra.mxu0 %v216
        %355 = vmatprep.subr.mxu0 0.0
        %356 = vmatpush1.msra.mxu0 %v217
        %357 = vmatprep.subr.mxu0 0.0
        %358 = vmatpush1.msra.mxu0 %v218
        %359 = vmatprep.subr.mxu0 0.0
        %360 = vmatpush1.msra.mxu0 %v219
        %361 = vmatprep.subr.mxu0 0.0
        %362 = vmatpush1.msra.mxu0 %v220
        %363 = vmatprep.subr.mxu0 0.0
        %364 = vmatpush1.msra.mxu0 0.0
        %365 = vmatprep.subr.mxu0 0.0
        %366 = vmatpush1.msra.mxu0 0.0
        %367 = vmatprep.subr.mxu0 0.0
        %368 = vmatpush1.msra.mxu0 0.0
        %369 = vmatprep.subr.mxu0 0.0
        %370 = vmatpush1.msra.mxu0 0.0
        %371 = vmatprep.subr.mxu0 0.0
        %372 = vmatpush1.msra.mxu0 0.0
        %373 = vmatprep.subr.mxu0 0.0
        %374 = vmatpush1.msra.mxu0 0.0
        %375 = vmatprep.subr.mxu0 0.0
        %376 = vmatpush1.msra.mxu0 0.0
        %377 = vmatprep.subr.mxu0 0.0
        %378 = vmatpush1.msra.mxu0 0.0
        %379 = vmatprep.subr.mxu0 0.0
        %380 = vmatpush1.msra.mxu0 0.0
        %381 = vmatprep.subr.mxu0 0.0
        %382 = vmatpush1.msra.mxu0 0.0
        %383 = vmatprep.subr.mxu0 0.0
        %384 = vmatpush1.msra.mxu0 0.0
        %385 = vmatprep.subr.mxu0 0.0
        %386 = vmatpush1.msra.mxu0 0.0
        %387 = vmatprep.subr.mxu0 0.0
        %388 = vmatpush1.msra.mxu0 0.0
        %389 = vmatprep.subr.mxu0 0.0
        %390 = vmatpush1.msra.mxu0 0.0
        %391 = vmatprep.subr.mxu0 0.0
        %392 = vmatpush1.msra.mxu0 0.0
        %393 = vmatprep.subr.mxu0 0.0
        %394 = vmatpush1.msra.mxu0 0.0
        %395 = vmatprep.mubr.f32.mxu0 0.0
        %396 = vmatmul.mubr.f32.gmra.mrb[0].mxu0 %v329
        %v397 = vpop.f32.mrb[0].mxu0
        %v398 = vadd.f32 0.0, %v397
        %v399 = vpop.f32.mrb[0].mxu0
        %400 = vmatprep.mubr.f32.mxu0 0.0
        %401 = vmatmul.mubr.f32.gmra.mrb[0].mxu0 %v330
        %v402 = vpop.f32.mrb[0].mxu0
        %v403 = vadd.f32 0.0, %v402
        %v404 = vpop.f32.mrb[0].mxu0
        %405 = vdwg.mxu0
        %vm406 = vcmp.ge.f32.partialorder %v398, 0.0
        %vm407 = vcmp.ge.f32.partialorder %v403, 0.0
        %v408 = vmul.f32 %v398, 0.1
        %v409 = vmul.f32 %v403, 0.1
        %v410 = vsel %vm406, %v398, %v408
        %v411 = vsel %vm407, %v403, %v409
        %412 = vmatprep.subr.mxu0 0.0
        %413 = vmatpush1.msra.mxu0 %v221
        %414 = vmatprep.subr.mxu0 0.0
        %415 = vmatpush1.msra.mxu0 %v222
        %416 = vmatprep.subr.mxu0 0.0
        %417 = vmatpush1.msra.mxu0 %v223
        %418 = vmatprep.subr.mxu0 0.0
        %419 = vmatpush1.msra.mxu0 %v224
        %420 = vmatprep.subr.mxu0 0.0
        %421 = vmatpush1.msra.mxu0 %v225
        %422 = vmatprep.subr.mxu0 0.0
        %423 = vmatpush1.msra.mxu0 %v226
        %424 = vmatprep.subr.mxu0 0.0
        %425 = vmatpush1.msra.mxu0 %v227
        %426 = vmatprep.subr.mxu0 0.0
        %427 = vmatpush1.msra.mxu0 %v228
        %428 = vmatprep.subr.mxu0 0.0
        %429 = vmatpush1.msra.mxu0 %v229
        %430 = vmatprep.subr.mxu0 0.0
        %431 = vmatpush1.msra.mxu0 %v230
        %432 = vmatprep.subr.mxu0 0.0
        %433 = vmatpush1.msra.mxu0 %v231
        %434 = vmatprep.subr.mxu0 0.0
        %435 = vmatpush1.msra.mxu0 %v232
        %436 = vmatprep.subr.mxu0 0.0
        %437 = vmatpush1.msra.mxu0 %v233
        %438 = vmatprep.subr.mxu0 0.0
        %439 = vmatpush1.msra.mxu0 %v234
        %440 = vmatprep.subr.mxu0 0.0
        %441 = vmatpush1.msra.mxu0 %v235
        %442 = vmatprep.subr.mxu0 0.0
        %443 = vmatpush1.msra.mxu0 %v236
        %444 = vmatprep.subr.mxu0 0.0
        %445 = vmatpush1.msra.mxu0 0.0
        %446 = vmatprep.subr.mxu0 0.0
        %447 = vmatpush1.msra.mxu0 0.0
        %448 = vmatprep.subr.mxu0 0.0
        %449 = vmatpush1.msra.mxu0 0.0
        %450 = vmatprep.subr.mxu0 0.0
        %451 = vmatpush1.msra.mxu0 0.0
        %452 = vmatprep.subr.mxu0 0.0
        %453 = vmatpush1.msra.mxu0 0.0
        %454 = vmatprep.subr.mxu0 0.0
        %455 = vmatpush1.msra.mxu0 0.0
        %456 = vmatprep.subr.mxu0 0.0
        %457 = vmatpush1.msra.mxu0 0.0
        %458 = vmatprep.subr.mxu0 0.0
        %459 = vmatpush1.msra.mxu0 0.0
        %460 = vmatprep.subr.mxu0 0.0
        %461 = vmatpush1.msra.mxu0 0.0
        %462 = vmatprep.subr.mxu0 0.0
        %463 = vmatpush1.msra.mxu0 0.0
        %464 = vmatprep.subr.mxu0 0.0
        %465 = vmatpush1.msra.mxu0 0.0
        %466 = vmatprep.subr.mxu0 0.0
        %467 = vmatpush1.msra.mxu0 0.0
        %468 = vmatprep.subr.mxu0 0.0
        %469 = vmatpush1.msra.mxu0 0.0
        %470 = vmatprep.subr.mxu0 0.0
        %471 = vmatpush1.msra.mxu0 0.0
        %472 = vmatprep.subr.mxu0 0.0
        %473 = vmatpush1.msra.mxu0 0.0
        %474 = vmatprep.subr.mxu0 0.0
        %475 = vmatpush1.msra.mxu0 0.0
        %476 = vmatprep.mubr.f32.mxu0 0.0
        %477 = vmatmul.mubr.f32.gmra.mrb[0].mxu0 %v410
        %v478 = vpop.f32.mrb[0].mxu0
        %v479 = vadd.f32 0.0, %v478
        %v480 = vpop.f32.mrb[0].mxu0
        %481 = vmatprep.mubr.f32.mxu0 0.0
        %482 = vmatmul.mubr.f32.gmra.mrb[0].mxu0 %v411
        %v483 = vpop.f32.mrb[0].mxu0
        %v484 = vadd.f32 0.0, %v483
        %v485 = vpop.f32.mrb[0].mxu0
        %486 = vdwg.mxu0
        %s487 = scalar_lea.vmem [#allocation2], %s201
        %488 = vst [vmem:[%s487] sm:$0xff] %v479
        %489 = vst [vmem:[%s487 + $0x8] sm:$0xff] %v484
        %490 = vst [vmem:[%s199] sm:$0xff] %v479
        %491 = vst [vmem:[%s199 + $0x8] sm:$0xff] %v484
      $region40: #{star_gcn_forward.1} parent=35 // pred_fallthru
        _
      %p492 = scmp.eq.s32.totalorder %s19, 1
      // Predicated region
      $region41: #{star_gcn_forward.1} parent=35 // pred_check
        %p493 = pneg %p492
      $region42: #{star_gcn_forward.1} parent=35 // pred_check_branch
        %495 = sbr.rel (%p493) target = $region44
      $region43: #{star_gcn_forward.1} parent=35 // pred_region
        %v496 = vld [vmem:[#allocation2] sm:$0xff]
        %v497 = vld [vmem:[#allocation2 + $0x8] sm:$0xff]
        %vm498 = vcmask 130048
        %v500 = vsel %vm498, %v203, 0
        %v503 = vsel %vm498, %v204, 0
        %505 = vmatprep.subr.mxu0 0.0
        %506 = vmatpush1.msra.mxu0 %v496
        %507 = vmatprep.subr.mxu0 0.0
        %508 = vmatpush1.msra.mxu0 %v497
        %509 = vmatprep.subr.mxu0 0.0
        %510 = vmatpush1.msra.mxu0 0.0
        %511 = vmatprep.subr.mxu0 0.0
        %512 = vmatpush1.msra.mxu0 0.0
        %513 = vmatprep.subr.mxu0 0.0
        %514 = vmatpush1.msra.mxu0 0.0
        %515 = vmatprep.subr.mxu0 0.0
        %516 = vmatpush1.msra.mxu0 0.0
        %517 = vmatprep.subr.mxu0 0.0
        %518 = vmatpush1.msra.mxu0 0.0
        %519 = vmatprep.subr.mxu0 0.0
        %520 = vmatpush1.msra.mxu0 0.0
        %521 = vmatprep.subr.mxu0 0.0
        %522 = vmatpush1.msra.mxu0 0.0
        %523 = vmatprep.subr.mxu0 0.0
        %524 = vmatpush1.msra.mxu0 0.0
        %525 = vmatprep.subr.mxu0 0.0
        %526 = vmatpush1.msra.mxu0 0.0
        %527 = vmatprep.subr.mxu0 0.0
        %528 = vmatpush1.msra.mxu0 0.0
        %529 = vmatprep.subr.mxu0 0.0
        %530 = vmatpush1.msra.mxu0 0.0
        %531 = vmatprep.subr.mxu0 0.0
        %532 = vmatpush1.msra.mxu0 0.0
        %533 = vmatprep.subr.mxu0 0.0
        %534 = vmatpush1.msra.mxu0 0.0
        %535 = vmatprep.subr.mxu0 0.0
        %536 = vmatpush1.msra.mxu0 0.0
        %537 = vmatprep.subr.mxu0 0.0
        %538 = vmatpush1.msra.mxu0 0.0
        %539 = vmatprep.subr.mxu0 0.0
        %540 = vmatpush1.msra.mxu0 0.0
        %541 = vmatprep.subr.mxu0 0.0
        %542 = vmatpush1.msra.mxu0 0.0
        %543 = vmatprep.subr.mxu0 0.0
        %544 = vmatpush1.msra.mxu0 0.0
        %545 = vmatprep.subr.mxu0 0.0
        %546 = vmatpush1.msra.mxu0 0.0
        %547 = vmatprep.subr.mxu0 0.0
        %548 = vmatpush1.msra.mxu0 0.0
        %549 = vmatprep.subr.mxu0 0.0
        %550 = vmatpush1.msra.mxu0 0.0
        %551 = vmatprep.subr.mxu0 0.0
        %552 = vmatpush1.msra.mxu0 0.0
        %553 = vmatprep.subr.mxu0 0.0
        %554 = vmatpush1.msra.mxu0 0.0
        %555 = vmatprep.subr.mxu0 0.0
        %556 = vmatpush1.msra.mxu0 0.0
        %557 = vmatprep.subr.mxu0 0.0
        %558 = vmatpush1.msra.mxu0 0.0
        %559 = vmatprep.subr.mxu0 0.0
        %560 = vmatpush1.msra.mxu0 0.0
        %561 = vmatprep.subr.mxu0 0.0
        %562 = vmatpush1.msra.mxu0 0.0
        %563 = vmatprep.subr.mxu0 0.0
        %564 = vmatpush1.msra.mxu0 0.0
        %565 = vmatprep.subr.mxu0 0.0
        %566 = vmatpush1.msra.mxu0 0.0
        %567 = vmatprep.subr.mxu0 0.0
        %568 = vmatpush1.msra.mxu0 0.0
        %569 = vmatprep.mubr.f32.mxu0 0.0
        %570 = vmatmul.mubr.f32.gmra.mrb[0].mxu0 %v500
        %v571 = vpop.f32.mrb[0].mxu0
        %v572 = vadd.f32 0.0, %v571
        %v573 = vpop.f32.mrb[0].mxu0
        %574 = vmatprep.mubr.f32.mxu0 0.0
        %575 = vmatmul.mubr.f32.gmra.mrb[0].mxu0 %v503
        %v576 = vpop.f32.mrb[0].mxu0
        %v577 = vadd.f32 0.0, %v576
        %v578 = vpop.f32.mrb[0].mxu0
        %579 = vdwg.mxu0
        %vm580 = vcmp.ge.f32.partialorder %v572, 0.0
        %vm581 = vcmp.ge.f32.partialorder %v577, 0.0
        %v582 = vmul.f32 %v572, 0.1
        %v583 = vmul.f32 %v577, 0.1
        %v584 = vsel %vm580, %v572, %v582
        %v585 = vsel %vm581, %v577, %v583
        %586 = vmatprep.subr.mxu0 0.0
        %587 = vmatpush1.msra.mxu0 %v205
        %588 = vmatprep.subr.mxu0 0.0
        %589 = vmatpush1.msra.mxu0 %v206
        %590 = vmatprep.subr.mxu0 0.0
        %591 = vmatpush1.msra.mxu0 %v207
        %592 = vmatprep.subr.mxu0 0.0
        %593 = vmatpush1.msra.mxu0 %v208
        %594 = vmatprep.subr.mxu0 0.0
        %595 = vmatpush1.msra.mxu0 %v209
        %596 = vmatprep.subr.mxu0 0.0
        %597 = vmatpush1.msra.mxu0 %v210
        %598 = vmatprep.subr.mxu0 0.0
        %599 = vmatpush1.msra.mxu0 %v211
        %600 = vmatprep.subr.mxu0 0.0
        %601 = vmatpush1.msra.mxu0 %v212
        %602 = vmatprep.subr.mxu0 0.0
        %603 = vmatpush1.msra.mxu0 %v213
        %604 = vmatprep.subr.mxu0 0.0
        %605 = vmatpush1.msra.mxu0 %v214
        %606 = vmatprep.subr.mxu0 0.0
        %607 = vmatpush1.msra.mxu0 %v215
        %608 = vmatprep.subr.mxu0 0.0
        %609 = vmatpush1.msra.mxu0 %v216
        %610 = vmatprep.subr.mxu0 0.0
        %611 = vmatpush1.msra.mxu0 %v217
        %612 = vmatprep.subr.mxu0 0.0
        %613 = vmatpush1.msra.mxu0 %v218
        %614 = vmatprep.subr.mxu0 0.0
        %615 = vmatpush1.msra.mxu0 %v219
        %616 = vmatprep.subr.mxu0 0.0
        %617 = vmatpush1.msra.mxu0 %v220
        %618 = vmatprep.subr.mxu0 0.0
        %619 = vmatpush1.msra.mxu0 0.0
        %620 = vmatprep.subr.mxu0 0.0
        %621 = vmatpush1.msra.mxu0 0.0
        %622 = vmatprep.subr.mxu0 0.0
        %623 = vmatpush1.msra.mxu0 0.0
        %624 = vmatprep.subr.mxu0 0.0
        %625 = vmatpush1.msra.mxu0 0.0
        %626 = vmatprep.subr.mxu0 0.0
        %627 = vmatpush1.msra.mxu0 0.0
        %628 = vmatprep.subr.mxu0 0.0
        %629 = vmatpush1.msra.mxu0 0.0
        %630 = vmatprep.subr.mxu0 0.0
        %631 = vmatpush1.msra.mxu0 0.0
        %632 = vmatprep.subr.mxu0 0.0
        %633 = vmatpush1.msra.mxu0 0.0
        %634 = vmatprep.subr.mxu0 0.0
        %635 = vmatpush1.msra.mxu0 0.0
        %636 = vmatprep.subr.mxu0 0.0
        %637 = vmatpush1.msra.mxu0 0.0
        %638 = vmatprep.subr.mxu0 0.0
        %639 = vmatpush1.msra.mxu0 0.0
        %640 = vmatprep.subr.mxu0 0.0
        %641 = vmatpush1.msra.mxu0 0.0
        %642 = vmatprep.subr.mxu0 0.0
        %643 = vmatpush1.msra.mxu0 0.0
        %644 = vmatprep.subr.mxu0 0.0
        %645 = vmatpush1.msra.mxu0 0.0
        %646 = vmatprep.subr.mxu0 0.0
        %647 = vmatpush1.msra.mxu0 0.0
        %648 = vmatprep.subr.mxu0 0.0
        %649 = vmatpush1.msra.mxu0 0.0
        %650 = vmatprep.mubr.f32.mxu0 0.0
        %651 = vmatmul.mubr.f32.gmra.mrb[0].mxu0 %v584
        %v652 = vpop.f32.mrb[0].mxu0
        %v653 = vadd.f32 0.0, %v652
        %v654 = vpop.f32.mrb[0].mxu0
        %655 = vmatprep.mubr.f32.mxu0 0.0
        %656 = vmatmul.mubr.f32.gmra.mrb[0].mxu0 %v585
        %v657 = vpop.f32.mrb[0].mxu0
        %v658 = vadd.f32 0.0, %v657
        %v659 = vpop.f32.mrb[0].mxu0
        %660 = vdwg.mxu0
        %vm661 = vcmp.ge.f32.partialorder %v653, 0.0
        %vm662 = vcmp.ge.f32.partialorder %v658, 0.0
        %v663 = vmul.f32 %v653, 0.1
        %v664 = vmul.f32 %v658, 0.1
        %v665 = vsel %vm661, %v653, %v663
        %v666 = vsel %vm662, %v658, %v664
        %667 = vmatprep.subr.mxu0 0.0
        %668 = vmatpush1.msra.mxu0 %v221
        %669 = vmatprep.subr.mxu0 0.0
        %670 = vmatpush1.msra.mxu0 %v222
        %671 = vmatprep.subr.mxu0 0.0
        %672 = vmatpush1.msra.mxu0 %v223
        %673 = vmatprep.subr.mxu0 0.0
        %674 = vmatpush1.msra.mxu0 %v224
        %675 = vmatprep.subr.mxu0 0.0
        %676 = vmatpush1.msra.mxu0 %v225
        %677 = vmatprep.subr.mxu0 0.0
        %678 = vmatpush1.msra.mxu0 %v226
        %679 = vmatprep.subr.mxu0 0.0
        %680 = vmatpush1.msra.mxu0 %v227
        %681 = vmatprep.subr.mxu0 0.0
        %682 = vmatpush1.msra.mxu0 %v228
        %683 = vmatprep.subr.mxu0 0.0
        %684 = vmatpush1.msra.mxu0 %v229
        %685 = vmatprep.subr.mxu0 0.0
        %686 = vmatpush1.msra.mxu0 %v230
        %687 = vmatprep.subr.mxu0 0.0
        %688 = vmatpush1.msra.mxu0 %v231
        %689 = vmatprep.subr.mxu0 0.0
        %690 = vmatpush1.msra.mxu0 %v232
        %691 = vmatprep.subr.mxu0 0.0
        %692 = vmatpush1.msra.mxu0 %v233
        %693 = vmatprep.subr.mxu0 0.0
        %694 = vmatpush1.msra.mxu0 %v234
        %695 = vmatprep.subr.mxu0 0.0
        %696 = vmatpush1.msra.mxu0 %v235
        %697 = vmatprep.subr.mxu0 0.0
        %698 = vmatpush1.msra.mxu0 %v236
        %699 = vmatprep.subr.mxu0 0.0
        %700 = vmatpush1.msra.mxu0 0.0
        %701 = vmatprep.subr.mxu0 0.0
        %702 = vmatpush1.msra.mxu0 0.0
        %703 = vmatprep.subr.mxu0 0.0
        %704 = vmatpush1.msra.mxu0 0.0
        %705 = vmatprep.subr.mxu0 0.0
        %706 = vmatpush1.msra.mxu0 0.0
        %707 = vmatprep.subr.mxu0 0.0
        %708 = vmatpush1.msra.mxu0 0.0
        %709 = vmatprep.subr.mxu0 0.0
        %710 = vmatpush1.msra.mxu0 0.0
        %711 = vmatprep.subr.mxu0 0.0
        %712 = vmatpush1.msra.mxu0 0.0
        %713 = vmatprep.subr.mxu0 0.0
        %714 = vmatpush1.msra.mxu0 0.0
        %715 = vmatprep.subr.mxu0 0.0
        %716 = vmatpush1.msra.mxu0 0.0
        %717 = vmatprep.subr.mxu0 0.0
        %718 = vmatpush1.msra.mxu0 0.0
        %719 = vmatprep.subr.mxu0 0.0
        %720 = vmatpush1.msra.mxu0 0.0
        %721 = vmatprep.subr.mxu0 0.0
        %722 = vmatpush1.msra.mxu0 0.0
        %723 = vmatprep.subr.mxu0 0.0
        %724 = vmatpush1.msra.mxu0 0.0
        %725 = vmatprep.subr.mxu0 0.0
        %726 = vmatpush1.msra.mxu0 0.0
        %727 = vmatprep.subr.mxu0 0.0
        %728 = vmatpush1.msra.mxu0 0.0
        %729 = vmatprep.subr.mxu0 0.0
        %730 = vmatpush1.msra.mxu0 0.0
        %731 = vmatprep.mubr.f32.mxu0 0.0
        %732 = vmatmul.mubr.f32.gmra.mrb[0].mxu0 %v665
        %v733 = vpop.f32.mrb[0].mxu0
        %v734 = vadd.f32 0.0, %v733
        %v735 = vpop.f32.mrb[0].mxu0
        %736 = vmatprep.mubr.f32.mxu0 0.0
        %737 = vmatmul.mubr.f32.gmra.mrb[0].mxu0 %v666
        %v738 = vpop.f32.mrb[0].mxu0
        %v739 = vadd.f32 0.0, %v738
        %v740 = vpop.f32.mrb[0].mxu0
        %741 = vdwg.mxu0
        %742 = vst [vmem:[%s199] sm:$0xff] %v734
        %743 = vst [vmem:[%s199 + $0x8] sm:$0xff] %v739
      $region44: #{star_gcn_forward.1} parent=35 // pred_fallthru
        _
      %s744 = smul.u32 2, %s20
      %p745 = scmp.lt.s32.totalorder %s19, 1
      %s746 = scalar_select %p745, %s19, 1
      %p747 = scmp.lt.s32.totalorder %s744, 1
      %s748 = scalar_select %p747, %s744, 1
      %s749 = smul.addr %s746, 2
      %s750 = sadd.s32 %s748, %s749
      %s751 = smul.addr %s750, 8
      %s752 = scalar_lea.vmem %s4, %s751
      // Predicated region
      $region45: #{star_gcn_forward.1} parent=35 // pred_check
        %p753 = pneg %p131
      $region46: #{star_gcn_forward.1} parent=35 // pred_check_branch
        %755 = sbr.rel (%p753) target = $region48
      $region47: #{star_gcn_forward.1} parent=35 // pred_region
        %s756 = smul.u32 2, %s20
      $region48: #{star_gcn_forward.1} parent=35 // pred_fallthru
        _
    $region36: #{star_gcn_forward.1} parent=5 // pred_fallthru
      _
    %p757 = scmp.le.s32.totalorder 2, %s10
    // Predicated region
    $region49: #{star_gcn_forward.1} parent=5 // pred_check
      %p758 = pneg %p757
    $region50: #{star_gcn_forward.1} parent=5 // pred_check_branch
      %760 = sbr.rel (%p758) target = $region52
    $region51: #{star_gcn_forward.1} parent=5 // pred_region
      %s761 = ssub.s32 %s10, 2
      // Predicated region
      $region53: #{star_gcn_forward.1} parent=51 // pred_check
        %p762 = pneg %p137
      $region54: #{star_gcn_forward.1} parent=51 // pred_check_branch
        %764 = sbr.rel (%p762) target = $region56
      $region55: #{star_gcn_forward.1} parent=51 // pred_region
        %s765 = smul.u32 2, %s22
        %p766 = scmp.lt.s32.totalorder %s21, 1
        %s767 = scalar_select %p766, %s21, 1
        %p768 = scmp.lt.s32.totalorder %s765, 1
        %s769 = scalar_select %p768, %s765, 1
        %s770 = smul.addr %s767, 2
        %s771 = sadd.s32 %s769, %s770
        %s772 = smul.addr %s771, 8
        %s773 = scalar_lea.vmem %s4, %s772
      $region56: #{star_gcn_forward.1} parent=51 // pred_fallthru
        _
    $region52: #{star_gcn_forward.1} parent=5 // pred_fallthru
      _
  $region6: #{star_gcn_forward.1} parent=0 // loop_footer
    %s14 = sadd.s32 1, %s10
  $region7: #{star_gcn_forward.1} parent=0 // loop_footer_branch
    %9 = sbr.rel target = $region3
  $region8: #{star_gcn_forward.1} parent=0 // loop_exit
    _

</llo_original>
